<compile_context>
chip_gen: v5e
topology: v5e:2x2
jax: 0.10.0
libtpu: 0.0.40
codegen_flags: <defaults>
</compile_context>

<pallas_src>
import functools

import jax
import jax.numpy as jnp
from jax import lax
from jax.experimental import pallas as pl
from jax.experimental.pallas import tpu as pltpu


def _round_up(v, m):
    return ((v + m - 1) // m) * m


def _vmem_limit_bytes():
    # Generation-aware: ~80% of physical VMEM (v5e/v6e: ~102 MiB, v7x: ~51 MiB).
    try:
        cap = int(pltpu.get_tpu_info().vmem_capacity_bytes)
    except Exception:
        cap = 64 * 1024 * 1024
    return int(cap * 0.8)


VMEM_LIMIT_BYTES = _vmem_limit_bytes()


def padded_num_nodes(num_nodes, tm=512):
    """Padded node count and the Stage-1 row tile that evenly divides it."""
    np0 = _round_up(num_nodes, 128)
    tile = tm if np0 >= tm else np0
    return _round_up(num_nodes, tile), tile


# ----------------------------- kernels ------------------------------------- #
def mlp_kernel(x_ref, w1_ref, b1_ref, w2_ref, b2_ref, z_ref, *, n_valid, tm):
    """relu(x @ W1 + b1) @ W2 + b2 for one row-tile of nodes (bf16 ops, f32 acc)."""
    h = jnp.dot(x_ref[...], w1_ref[...], preferred_element_type=jnp.float32)
    h = jnp.maximum(h + b1_ref[...], 0.0)
    z = jnp.dot(h.astype(jnp.bfloat16), w2_ref[...],
                preferred_element_type=jnp.float32)
    z = z + b2_ref[...]
    # Zero padded node rows (they otherwise pick up relu(b1)@W2 + b2) so the pad
    # region of z0 is exactly 0 and downstream correctness does not silently rely
    # on A_hat's zero pad columns.
    row = pl.program_id(0) * tm + lax.broadcasted_iota(jnp.int32, z.shape, 0)
    z = jnp.where(row < n_valid, z, 0.0)
    z_ref[...] = z.astype(z_ref.dtype)


def gpr_prop_kernel(temp_ref, z0_ref, a_ref, hid_ref, zcur_ref):
    """One GPR hop per grid iteration k: z <- A z ; hidden += temp[k+1] * z."""
    k = pl.program_id(0)

    @pl.when(k == 0)
    def _init():
        z0 = z0_ref[...]                                   # bf16
        hid_ref[...] = temp_ref[0] * z0.astype(jnp.float32)
        zcur_ref[...] = z0

    z_new = jnp.dot(a_ref[...], zcur_ref[...],
                    preferred_element_type=jnp.float32)
    hid_ref[...] += temp_ref[k + 1] * z_new
    zcur_ref[...] = z_new.astype(zcur_ref.dtype)


# ----------------------------- wrapper -------------------------------------- #
def gprgnn_forward(x, w1, b1, w2, b2, a_hat_p, temp, *, K, tm=512):
    """GPRGNN forward (eval mode). a_hat_p: pre-padded (Np, Np) bf16 normalized adjacency.

    Returns (N, C) float32.
    """
    N, F = x.shape
    H = w1.shape[1]
    C = w2.shape[1]

    Np, tile = padded_num_nodes(N, tm)
    assert a_hat_p.shape == (Np, Np), "a_hat_p must be pre-padded to (Np, Np)"
    Fp = _round_up(F, 128)
    Hp = _round_up(H, 128)
    Cp = _round_up(C, 128)

    f32, bf16 = jnp.float32, jnp.bfloat16
    # Zero-pad to lane-dense shapes; matmul operands in bf16, biases added in f32.
    xp = jnp.zeros((Np, Fp), bf16).at[:N, :F].set(x.astype(bf16))
    w1p = jnp.zeros((Fp, Hp), bf16).at[:F, :H].set(w1.astype(bf16))
    b1p = jnp.zeros((1, Hp), f32).at[:, :H].set(b1.astype(f32))
    w2p = jnp.zeros((Hp, Cp), bf16).at[:H, :C].set(w2.astype(bf16))
    b2p = jnp.zeros((1, Cp), f32).at[:, :C].set(b2.astype(f32))
    temp_s = temp.astype(f32).reshape(K + 1)

    resident = dict(pipeline_mode=pl.Buffered(1))  # constant-index blocks: no double-buffer

    # ---- Stage 1: row-tiled MLP (parallel over node tiles), bf16 z0 out ----
    z0 = pl.pallas_call(
        functools.partial(mlp_kernel, n_valid=N, tm=tile),
        out_shape=jax.ShapeDtypeStruct((Np, Cp), bf16),
        grid_spec=pltpu.PrefetchScalarGridSpec(
            num_scalar_prefetch=0,
            grid=(Np // tile,),
            in_specs=[
                pl.BlockSpec((tile, Fp), lambda i: (i, 0)),
                pl.BlockSpec((Fp, Hp), lambda i: (0, 0), **resident),
                pl.BlockSpec((1, Hp), lambda i: (0, 0), **resident),
                pl.BlockSpec((Hp, Cp), lambda i: (0, 0), **resident),
                pl.BlockSpec((1, Cp), lambda i: (0, 0), **resident),
            ],
            out_specs=pl.BlockSpec((tile, Cp), lambda i: (i, 0)),
        ),
        compiler_params=pltpu.CompilerParams(
            dimension_semantics=("parallel",),
            vmem_limit_bytes=VMEM_LIMIT_BYTES),
    )(xp, w1p, b1p, w2p, b2p)

    # ---- Stage 2: GPR propagation; k is an "arbitrary" reduction-style axis ----
    gpr_cost = pl.CostEstimate(
        flops=2 * K * Np * Np * Cp,
        transcendentals=0,
        bytes_accessed=2 * Np * Np + 2 * Np * Cp + 4 * Np * Cp,
    )
    hidden = pl.pallas_call(
        gpr_prop_kernel,
        out_shape=jax.ShapeDtypeStruct((Np, Cp), f32),
        grid_spec=pltpu.PrefetchScalarGridSpec(
            num_scalar_prefetch=0,
            grid=(K,),
            in_specs=[
                pl.BlockSpec(memory_space=pltpu.MemorySpace.SMEM),        # temp (K+1,)
                pl.BlockSpec((Np, Cp), lambda k: (0, 0), **resident),     # z0 (resident bf16)
                pl.BlockSpec((Np, Np), lambda k: (0, 0), **resident),     # A_hat (resident bf16)
            ],
            out_specs=pl.BlockSpec((Np, Cp), lambda k: (0, 0)),           # f32 accumulator
            scratch_shapes=[pltpu.VMEM((Np, Cp), bf16)],                  # running z
        ),
        compiler_params=pltpu.CompilerParams(
            dimension_semantics=("arbitrary",),
            vmem_limit_bytes=VMEM_LIMIT_BYTES),
        cost_estimate=gpr_cost,
    )(temp_s, z0, a_hat_p)

    return hidden[:N, :C]


# ------------------------- host-side glue / prep ---------------------------- #
def gcn_norm_dense(edge_index, num_nodes, padded_size=None):
    """Dense gcn_norm (add remaining self-loops, sym-normalize) at padded_size, f32."""
    size = num_nodes if padded_size is None else padded_size
    src, dst = edge_index[0], edge_index[1]
    a = jnp.zeros((size, size), jnp.float32)
    a = a.at[src, dst].set(1.0)
    idx = jnp.arange(num_nodes)
    a = a.at[idx, idx].set(1.0)  # add_remaining_self_loops: diag exactly 1
    deg = jnp.sum(a, axis=1)
    d_inv_sqrt = jnp.where(deg > 0, 1.0 / jnp.sqrt(deg), 0.0)
    return d_inv_sqrt[:, None] * a * d_inv_sqrt[None, :]


def ppr_temp(K, alpha):
    k = jnp.arange(K + 1, dtype=jnp.float32)
    temp = alpha * (1.0 - alpha) ** k
    temp = temp.at[-1].set((1.0 - alpha) ** K)
    return temp


if __name__ == "__main__":
    # Small, deterministic problem: N nodes, in=8, hidden=32, out=4, K=10.
    N, F_IN, HID, OUT = 16, 8, 32, 4
    K, ALPHA = 10, 0.1

    key = jax.random.PRNGKey(0)
    kx, kw1, kb1, kw2, kb2, ke = jax.random.split(key, 6)

    x = jax.random.normal(kx, (N, F_IN), dtype=jnp.float32)

    # nn.Linear-style uniform init, stored as (in, out).
    lim1 = 1.0 / jnp.sqrt(F_IN)
    w1 = jax.random.uniform(kw1, (F_IN, HID), jnp.float32, -lim1, lim1)
    b1 = jax.random.uniform(kb1, (1, HID), jnp.float32, -lim1, lim1)
    lim2 = 1.0 / jnp.sqrt(HID)
    w2 = jax.random.uniform(kw2, (HID, OUT), jnp.float32, -lim2, lim2)
    b2 = jax.random.uniform(kb2, (1, OUT), jnp.float32, -lim2, lim2)

    # Deterministic random edge list (directed pairs; self-loops handled by gcn_norm).
    E = 40
    src = jax.random.randint(ke, (E,), 0, N)
    dst = (src + 1 + jax.random.randint(jax.random.fold_in(ke, 1), (E,), 0, N - 1)) % N
    edge_index = jnp.stack([src, dst], axis=0)

    # A_hat built once per graph, directly at padded size, cached as bf16 (hoisted
    # out of the per-forward path).
    Np, _ = padded_num_nodes(N)
    a_hat_f32 = gcn_norm_dense(edge_index, N, padded_size=Np)   # (Np, Np) f32
    a_hat_p = a_hat_f32.astype(jnp.bfloat16)                    # kernel input (cached)
    a_hat_ref = a_hat_f32[:N, :N]                               # f32 reference copy

    temp = ppr_temp(K, ALPHA)                                   # (K+1,)

    fwd = jax.jit(functools.partial(gprgnn_forward, K=K))
    out = fwd(x, w1, b1, w2, b2, a_hat_p, temp)
    out = jax.block_until_ready(out)

    # Pure-JAX float32 reference check (kernel uses bf16 operands -> looser tol).
    h = jnp.maximum(x @ w1 + b1, 0.0)
    z = h @ w2 + b2
    ref = z * temp[0]
    zz = z
    for k in range(K):
        zz = a_hat_ref @ zz
        ref = ref + temp[k + 1] * zz
    assert jnp.allclose(out, ref, atol=2e-2, rtol=2e-2), "mismatch vs reference"

    print("KERNEL_OK")
</pallas_src>

<mosaic_0001>
module attributes {stable_mosaic.version = 11 : i64} {
  func.func @mlp_kernel(%arg0: i32, %arg1: memref<128x128xbf16, #tpu.memory_space<vmem>>, %arg2: memref<128x128xbf16, #tpu.memory_space<vmem>>, %arg3: memref<1x128xf32, #tpu.memory_space<vmem>>, %arg4: memref<128x128xbf16, #tpu.memory_space<vmem>>, %arg5: memref<1x128xf32, #tpu.memory_space<vmem>>, %arg6: memref<128x128xbf16, #tpu.memory_space<vmem>>) attributes {dimension_semantics = [#tpu.dimension_semantics<parallel>], iteration_bounds = array<i64: 1>, scalar_prefetch = 0 : i64, scratch_operands = 0 : i64, tpu.core_type = #tpu.core_type<tc>, window_params = [{transform_indices = @transform_0, window_bounds = array<i64: 128, 128>}, {pipeline_mode = #tpu.pipeline_mode<synchronous>, transform_indices = @transform_1, window_bounds = array<i64: 128, 128>}, {pipeline_mode = #tpu.pipeline_mode<synchronous>, transform_indices = @transform_2, window_bounds = array<i64: 1, 128>}, {pipeline_mode = #tpu.pipeline_mode<synchronous>, transform_indices = @transform_3, window_bounds = array<i64: 128, 128>}, {pipeline_mode = #tpu.pipeline_mode<synchronous>, transform_indices = @transform_4, window_bounds = array<i64: 1, 128>}, {transform_indices = @transform_5, window_bounds = array<i64: 128, 128>}]} {
    %c0 = arith.constant 0 : index
    %c0_0 = arith.constant 0 : index
    %0 = vector.load %arg1[%c0, %c0_0] : memref<128x128xbf16, #tpu.memory_space<vmem>>, vector<128x128xbf16>
    %c0_1 = arith.constant 0 : index
    %c0_2 = arith.constant 0 : index
    %1 = vector.load %arg2[%c0_1, %c0_2] : memref<128x128xbf16, #tpu.memory_space<vmem>>, vector<128x128xbf16>
    %cst = arith.constant dense<0.000000e+00> : vector<128x128xf32>
    %2 = tpu.matmul %0, %1, %cst {dimension_numbers = #tpu.dot_dimension_numbers<[1], [0], [0], [1], [0, 0, 1, 1], [], []>} : vector<128x128xbf16>, vector<128x128xbf16>, vector<128x128xf32> -> vector<128x128xf32>
    %c0_3 = arith.constant 0 : index
    %c0_4 = arith.constant 0 : index
    %3 = vector.load %arg3[%c0_3, %c0_4] : memref<1x128xf32, #tpu.memory_space<vmem>>, vector<1x128xf32>
    %4 = vector.broadcast %3 : vector<1x128xf32> to vector<128x128xf32>
    %5 = arith.addf %2, %4 : vector<128x128xf32>
    %cst_5 = arith.constant 0.000000e+00 : f32
    %6 = vector.broadcast %cst_5 : f32 to vector<128x128xf32>
    %7 = arith.maximumf %5, %6 : vector<128x128xf32>
    %8 = arith.truncf %7 : vector<128x128xf32> to vector<128x128xbf16>
    %c0_6 = arith.constant 0 : index
    %c0_7 = arith.constant 0 : index
    %9 = vector.load %arg4[%c0_6, %c0_7] : memref<128x128xbf16, #tpu.memory_space<vmem>>, vector<128x128xbf16>
    %cst_8 = arith.constant dense<0.000000e+00> : vector<128x128xf32>
    %10 = tpu.matmul %8, %9, %cst_8 {dimension_numbers = #tpu.dot_dimension_numbers<[1], [0], [0], [1], [0, 0, 1, 1], [], []>} : vector<128x128xbf16>, vector<128x128xbf16>, vector<128x128xf32> -> vector<128x128xf32>
    %c0_9 = arith.constant 0 : index
    %c0_10 = arith.constant 0 : index
    %11 = vector.load %arg5[%c0_9, %c0_10] : memref<1x128xf32, #tpu.memory_space<vmem>>, vector<1x128xf32>
    %12 = vector.broadcast %11 : vector<1x128xf32> to vector<128x128xf32>
    %13 = arith.addf %10, %12 : vector<128x128xf32>
    %c128_i32 = arith.constant 128 : i32
    %14 = arith.muli %arg0, %c128_i32 : i32
    %15 = tpu.iota {dimensions = array<i32: 0>} : vector<128x128xi32>
    %16 = vector.broadcast %14 : i32 to vector<128x128xi32>
    %17 = arith.addi %16, %15 : vector<128x128xi32>
    %c16_i32 = arith.constant 16 : i32
    %18 = vector.broadcast %c16_i32 : i32 to vector<128x128xi32>
    %19 = arith.cmpi slt, %17, %18 : vector<128x128xi32>
    %cst_11 = arith.constant 0.000000e+00 : f32
    %20 = vector.broadcast %cst_11 : f32 to vector<128x128xf32>
    %21 = arith.select %19, %13, %20 : vector<128x128xi1>, vector<128x128xf32>
    %22 = arith.truncf %21 : vector<128x128xf32> to vector<128x128xbf16>
    %c0_12 = arith.constant 0 : index
    %c0_13 = arith.constant 0 : index
    %23 = vector.load %arg6[%c0_12, %c0_13] : memref<128x128xbf16, #tpu.memory_space<vmem>>, vector<128x128xbf16>
    tpu.vector_store %arg6[%c0_12, %c0_13], %22 {strides = array<i32>} : memref<128x128xbf16, #tpu.memory_space<vmem>>, vector<128x128xbf16>,
    return
  }
  func.func @transform_0(%arg0: i32) -> (i32, i32) {
    %c0_i32 = arith.constant 0 : i32
    %c0_i32_0 = arith.constant 0 : i32
    return %arg0, %c0_i32 : i32, i32
  }
  func.func @transform_1(%arg0: i32) -> (i32, i32) {
    %c0_i32 = arith.constant 0 : i32
    %c0_i32_0 = arith.constant 0 : i32
    %c0_i32_1 = arith.constant 0 : i32
    return %c0_i32, %c0_i32_0 : i32, i32
  }
  func.func @transform_2(%arg0: i32) -> (i32, i32) {
    %c0_i32 = arith.constant 0 : i32
    %c0_i32_0 = arith.constant 0 : i32
    %c0_i32_1 = arith.constant 0 : i32
    return %c0_i32, %c0_i32_0 : i32, i32
  }
  func.func @transform_3(%arg0: i32) -> (i32, i32) {
    %c0_i32 = arith.constant 0 : i32
    %c0_i32_0 = arith.constant 0 : i32
    %c0_i32_1 = arith.constant 0 : i32
    return %c0_i32, %c0_i32_0 : i32, i32
  }
  func.func @transform_4(%arg0: i32) -> (i32, i32) {
    %c0_i32 = arith.constant 0 : i32
    %c0_i32_0 = arith.constant 0 : i32
    %c0_i32_1 = arith.constant 0 : i32
    return %c0_i32, %c0_i32_0 : i32, i32
  }
  func.func @transform_5(%arg0: i32) -> (i32, i32) {
    %c0_i32 = arith.constant 0 : i32
    %c0_i32_0 = arith.constant 0 : i32
    return %arg0, %c0_i32 : i32, i32
  }
}

module attributes {stable_mosaic.version = 11 : i64} {
  func.func @gpr_prop_kernel(%arg0: i32, %arg1: memref<11xf32, #tpu.memory_space<smem>>, %arg2: memref<128x128xbf16, #tpu.memory_space<vmem>>, %arg3: memref<128x128xbf16, #tpu.memory_space<vmem>>, %arg4: memref<128x128xf32, #tpu.memory_space<vmem>>, %arg5: memref<128x128xbf16, #tpu.memory_space<vmem>>) attributes {dimension_semantics = [#tpu.dimension_semantics<arbitrary>], iteration_bounds = array<i64: 10>, scalar_prefetch = 0 : i64, scratch_operands = 1 : i64, tpu.core_type = #tpu.core_type<tc>, window_params = [{transform_indices = @transform_0, window_bounds = array<i64: 11>}, {pipeline_mode = #tpu.pipeline_mode<synchronous>, transform_indices = @transform_1, window_bounds = array<i64: 128, 128>}, {pipeline_mode = #tpu.pipeline_mode<synchronous>, transform_indices = @transform_2, window_bounds = array<i64: 128, 128>}, {pipeline_mode = #tpu.pipeline_mode<synchronous>, transform_indices = @transform_3, window_bounds = array<i64: 128, 128>}]} {
    %c0_i32 = arith.constant 0 : i32
    %0 = arith.cmpi eq, %arg0, %c0_i32 : i32
    %1 = arith.extui %0 : i1 to i32
    %c0_i32_0 = arith.constant 0 : i32
    %2 = arith.cmpi ne, %1, %c0_i32_0 : i32
    scf.if %2 {
      %c0_10 = arith.constant 0 : index
      %c0_11 = arith.constant 0 : index
      %16 = vector.load %arg2[%c0_10, %c0_11] : memref<128x128xbf16, #tpu.memory_space<vmem>>, vector<128x128xbf16>
      %c0_12 = arith.constant 0 : index
      %17 = memref.load %arg1[%c0_12] : memref<11xf32, #tpu.memory_space<smem>>
      %18 = arith.extf %16 : vector<128x128xbf16> to vector<128x128xf32>
      %19 = vector.broadcast %17 : f32 to vector<128x128xf32>
      %20 = arith.mulf %19, %18 : vector<128x128xf32>
      %c0_13 = arith.constant 0 : index
      %c0_14 = arith.constant 0 : index
      %21 = vector.load %arg4[%c0_13, %c0_14] : memref<128x128xf32, #tpu.memory_space<vmem>>, vector<128x128xf32>
      tpu.vector_store %arg4[%c0_13, %c0_14], %20 {strides = array<i32>} : memref<128x128xf32, #tpu.memory_space<vmem>>, vector<128x128xf32>,
      %c0_15 = arith.constant 0 : index
      %c0_16 = arith.constant 0 : index
      %22 = vector.load %arg5[%c0_15, %c0_16] : memref<128x128xbf16, #tpu.memory_space<vmem>>, vector<128x128xbf16>
      tpu.vector_store %arg5[%c0_15, %c0_16], %16 {strides = array<i32>} : memref<128x128xbf16, #tpu.memory_space<vmem>>, vector<128x128xbf16>,
    } else {
    }
    %c0 = arith.constant 0 : index
    %c0_1 = arith.constant 0 : index
    %3 = vector.load %arg3[%c0, %c0_1] : memref<128x128xbf16, #tpu.memory_space<vmem>>, vector<128x128xbf16>
    %c0_2 = arith.constant 0 : index
    %c0_3 = arith.constant 0 : index
    %4 = vector.load %arg5[%c0_2, %c0_3] : memref<128x128xbf16, #tpu.memory_space<vmem>>, vector<128x128xbf16>
    %cst = arith.constant dense<0.000000e+00> : vector<128x128xf32>
    %5 = tpu.matmul %3, %4, %cst {dimension_numbers = #tpu.dot_dimension_numbers<[1], [0], [0], [1], [0, 0, 1, 1], [], []>} : vector<128x128xbf16>, vector<128x128xbf16>, vector<128x128xf32> -> vector<128x128xf32>
    %c0_4 = arith.constant 0 : index
    %c0_5 = arith.constant 0 : index
    %6 = vector.load %arg4[%c0_4, %c0_5] : memref<128x128xf32, #tpu.memory_space<vmem>>, vector<128x128xf32>
    %c1_i32 = arith.constant 1 : i32
    %7 = arith.addi %arg0, %c1_i32 : i32
    %8 = arith.index_cast %7 : i32 to index
    %9 = memref.load %arg1[%8] : memref<11xf32, #tpu.memory_space<smem>>
    %10 = vector.broadcast %9 : f32 to vector<128x128xf32>
    %11 = arith.mulf %10, %5 : vector<128x128xf32>
    %12 = arith.addf %6, %11 : vector<128x128xf32>
    %c0_6 = arith.constant 0 : index
    %c0_7 = arith.constant 0 : index
    %13 = vector.load %arg4[%c0_6, %c0_7] : memref<128x128xf32, #tpu.memory_space<vmem>>, vector<128x128xf32>
    tpu.vector_store %arg4[%c0_6, %c0_7], %12 {strides = array<i32>} : memref<128x128xf32, #tpu.memory_space<vmem>>, vector<128x128xf32>,
    %14 = arith.truncf %5 : vector<128x128xf32> to vector<128x128xbf16>
    %c0_8 = arith.constant 0 : index
    %c0_9 = arith.constant 0 : index
    %15 = vector.load %arg5[%c0_8, %c0_9] : memref<128x128xbf16, #tpu.memory_space<vmem>>, vector<128x128xbf16>
    tpu.vector_store %arg5[%c0_8, %c0_9], %14 {strides = array<i32>} : memref<128x128xbf16, #tpu.memory_space<vmem>>, vector<128x128xbf16>,
    return
  }
  func.func @transform_0(%arg0: i32) -> i32 {
    %c0_i32 = arith.constant 0 : i32
    %c0_i32_0 = arith.constant 0 : i32
    return %c0_i32 : i32
  }
  func.func @transform_1(%arg0: i32) -> (i32, i32) {
    %c0_i32 = arith.constant 0 : i32
    %c0_i32_0 = arith.constant 0 : i32
    %c0_i32_1 = arith.constant 0 : i32
    return %c0_i32, %c0_i32_0 : i32, i32
  }
  func.func @transform_2(%arg0: i32) -> (i32, i32) {
    %c0_i32 = arith.constant 0 : i32
    %c0_i32_0 = arith.constant 0 : i32
    %c0_i32_1 = arith.constant 0 : i32
    return %c0_i32, %c0_i32_0 : i32, i32
  }
  func.func @transform_3(%arg0: i32) -> (i32, i32) {
    %c0_i32 = arith.constant 0 : i32
    %c0_i32_0 = arith.constant 0 : i32
    %c0_i32_1 = arith.constant 0 : i32
    return %c0_i32, %c0_i32_0 : i32, i32
  }
}

</mosaic_0001>

<llo_original>
// kernel: gprgnn_forward.2
$region0: #{gprgnn_forward.2}
  #allocation0 [shape = 'u32[]', space=smem, size = 0x4, offset = 0x4, fixed_abs, tag = 'smem constant byte address 0x4 - core index']
  #allocation1 [shape = 'u32[72,128]{1,0:T(1,128)}', space=vmem, size = 0x9000, scoped, tag = 'internal scratch']
  %s0 = inlined_call_operand.vmem [shape: bf16[128,128], index: 0, kind: input, shape index: {}]
  %s1 = inlined_call_operand.vmem [shape: bf16[128,128], index: 1, kind: input, shape index: {}]
  %s2 = inlined_call_operand.vmem [shape: f32[1,128], index: 2, kind: input, shape index: {}]
  %s3 = inlined_call_operand.vmem [shape: bf16[128,128], index: 3, kind: input, shape index: {}]
  %s4 = inlined_call_operand.vmem [shape: f32[1,128], index: 4, kind: input, shape index: {}]
  %s5 = inlined_call_operand.vmem [shape: bf16[128,128], index: 5, kind: output, shape index: {}]
  %s6 = sld [smem:[#allocation0]]
  $region30: #{gprgnn_forward.2} parent=0
    _
  %s8 = ssub.s32 1, %s6
  %s9 = scalar_select 0, %s8, %s6
  // Predicated region
  $region2: #{gprgnn_forward.2} parent=0 // pred_check
    _
  $region3: #{gprgnn_forward.2} parent=0 // pred_check_branch
    %11 = sbr.rel (0) target = $region5
  $region4: #{gprgnn_forward.2} parent=0 // pred_region
    _
  $region5: #{gprgnn_forward.2} parent=0 // pred_fallthru
    _
  // Predicated region
  $region6: #{gprgnn_forward.2} parent=0 // pred_check
    _
  $region7: #{gprgnn_forward.2} parent=0 // pred_check_branch
    %13 = sbr.rel (0) target = $region9
  $region8: #{gprgnn_forward.2} parent=0 // pred_region
    _
  $region9: #{gprgnn_forward.2} parent=0 // pred_fallthru
    _
  // Predicated region
  $region10: #{gprgnn_forward.2} parent=0 // pred_check
    _
  $region11: #{gprgnn_forward.2} parent=0 // pred_check_branch
    %15 = sbr.rel (0) target = $region13
  $region12: #{gprgnn_forward.2} parent=0 // pred_region
    _
  $region13: #{gprgnn_forward.2} parent=0 // pred_fallthru
    _
  // Predicated region
  $region14: #{gprgnn_forward.2} parent=0 // pred_check
    _
  $region15: #{gprgnn_forward.2} parent=0 // pred_check_branch
    %17 = sbr.rel (0) target = $region17
  $region16: #{gprgnn_forward.2} parent=0 // pred_region
    _
  $region17: #{gprgnn_forward.2} parent=0 // pred_fallthru
    _
  // Predicated region
  $region18: #{gprgnn_forward.2} parent=0 // pred_check
    _
  $region19: #{gprgnn_forward.2} parent=0 // pred_check_branch
    %19 = sbr.rel (0) target = $region21
  $region20: #{gprgnn_forward.2} parent=0 // pred_region
    _
  $region21: #{gprgnn_forward.2} parent=0 // pred_fallthru
    _
  %v20 = vld [vmem:[%s0] sm:$0xf]
  %v21 = vld [vmem:[%s0 + $0x4] sm:$0xf]
  %v22 = vld [vmem:[%s0 + $0x8] sm:$0xf]
  %v23 = vld [vmem:[%s0 + $0xc] sm:$0xf]
  %v24 = vld [vmem:[%s0 + $0x10] sm:$0xf]
  %v25 = vld [vmem:[%s0 + $0x14] sm:$0xf]
  %v26 = vld [vmem:[%s0 + $0x18] sm:$0xf]
  %v27 = vld [vmem:[%s0 + $0x1c] sm:$0xf]
  %v28 = vld [vmem:[%s0 + $0x20] sm:$0xf]
  %v29 = vld [vmem:[%s0 + $0x24] sm:$0xf]
  %v30 = vld [vmem:[%s0 + $0x28] sm:$0xf]
  %v31 = vld [vmem:[%s0 + $0x2c] sm:$0xf]
  %v32 = vld [vmem:[%s0 + $0x30] sm:$0xf]
  %v33 = vld [vmem:[%s0 + $0x34] sm:$0xf]
  %v34 = vld [vmem:[%s0 + $0x38] sm:$0xf]
  %v35 = vld [vmem:[%s0 + $0x3c] sm:$0xf]
  %v36 = vld [vmem:[%s1] sm:$0xf]
  %v37 = vld [vmem:[%s1 + $0x4] sm:$0xf]
  %v38 = vld [vmem:[%s1 + $0x8] sm:$0xf]
  %v39 = vld [vmem:[%s1 + $0xc] sm:$0xf]
  %v40 = vld [vmem:[%s1 + $0x10] sm:$0xf]
  %v41 = vld [vmem:[%s1 + $0x14] sm:$0xf]
  %v42 = vld [vmem:[%s1 + $0x18] sm:$0xf]
  %v43 = vld [vmem:[%s1 + $0x1c] sm:$0xf]
  %v44 = vld [vmem:[%s1 + $0x20] sm:$0xf]
  %v45 = vld [vmem:[%s1 + $0x24] sm:$0xf]
  %v46 = vld [vmem:[%s1 + $0x28] sm:$0xf]
  %v47 = vld [vmem:[%s1 + $0x2c] sm:$0xf]
  %v48 = vld [vmem:[%s1 + $0x30] sm:$0xf]
  %v49 = vld [vmem:[%s1 + $0x34] sm:$0xf]
  %v50 = vld [vmem:[%s1 + $0x38] sm:$0xf]
  %v51 = vld [vmem:[%s1 + $0x3c] sm:$0xf]
  %v52 = vld [vmem:[%s2] sm:$0x1]
  %v54 = vperm.slane %v52, 0
  %v72 = vunpack.c.l.b16 %v20
  %v73 = vunpack.c.l.b16 %v21
  %v74 = vunpack.c.l.b16 %v22
  %v75 = vunpack.c.l.b16 %v23
  %v76 = vunpack.c.l.b16 %v24
  %v77 = vunpack.c.l.b16 %v25
  %v78 = vunpack.c.l.b16 %v26
  %v79 = vunpack.c.l.b16 %v27
  %v80 = vunpack.c.l.b16 %v28
  %v81 = vunpack.c.l.b16 %v29
  %v82 = vunpack.c.l.b16 %v30
  %v83 = vunpack.c.l.b16 %v31
  %v84 = vunpack.c.l.b16 %v32
  %v85 = vunpack.c.l.b16 %v33
  %v86 = vunpack.c.l.b16 %v34
  %v87 = vunpack.c.l.b16 %v35
  %v88 = vpack.c.b16 %v73, %v72
  %v89 = vpack.c.b16 %v75, %v74
  %v90 = vpack.c.b16 %v77, %v76
  %v91 = vpack.c.b16 %v79, %v78
  %v92 = vpack.c.b16 %v81, %v80
  %v93 = vpack.c.b16 %v83, %v82
  %v94 = vpack.c.b16 %v85, %v84
  %v95 = vpack.c.b16 %v87, %v86
  %v120 = vunpack.c.l.b16 %v36
  %v121 = vunpack.c.l.b16 %v37
  %v122 = vunpack.c.l.b16 %v38
  %v123 = vunpack.c.l.b16 %v39
  %v124 = vunpack.c.l.b16 %v40
  %v125 = vunpack.c.l.b16 %v41
  %v126 = vunpack.c.l.b16 %v42
  %v127 = vunpack.c.l.b16 %v43
  %v128 = vunpack.c.l.b16 %v44
  %v129 = vunpack.c.l.b16 %v45
  %v130 = vunpack.c.l.b16 %v46
  %v131 = vunpack.c.l.b16 %v47
  %v132 = vunpack.c.l.b16 %v48
  %v133 = vunpack.c.l.b16 %v49
  %v134 = vunpack.c.l.b16 %v50
  %v135 = vunpack.c.l.b16 %v51
  %v136 = vpack.c.b16 %v121, %v120
  %v137 = vpack.c.b16 %v123, %v122
  %v138 = vpack.c.b16 %v125, %v124
  %v139 = vpack.c.b16 %v127, %v126
  %v140 = vpack.c.b16 %v129, %v128
  %v141 = vpack.c.b16 %v131, %v130
  %v142 = vpack.c.b16 %v133, %v132
  %v143 = vpack.c.b16 %v135, %v134
  %152 = vmatpush.bf16.msra.mxu0 %v143
  %153 = vmatpush.bf16.msra.mxu0 %v142
  %154 = vmatpush.bf16.msra.mxu0 %v141
  %155 = vmatpush.bf16.msra.mxu0 %v140
  %156 = vmatpush.bf16.msra.mxu0 %v139
  %157 = vmatpush.bf16.msra.mxu0 %v138
  %158 = vmatpush.bf16.msra.mxu0 %v137
  %159 = vmatpush.bf16.msra.mxu0 %v136
  %160 = vmatmul.bf16.gmra.mxu0 %v88
  %v161 = vpop.f32.mrf.mxu0
  %v162 = vadd.f32 %v54, %v161
  %v163 = vpop.f32.mrf.mxu0
  %v164 = vadd.f32 %v54, %v163
  %165 = vmatmul.bf16.gmra.mxu0 %v89
  %v166 = vpop.f32.mrf.mxu0
  %v167 = vadd.f32 %v54, %v166
  %v168 = vpop.f32.mrf.mxu0
  %v169 = vadd.f32 %v54, %v168
  %170 = vmatmul.bf16.gmra.mxu0 %v90
  %v171 = vpop.f32.mrf.mxu0
  %v172 = vadd.f32 %v54, %v171
  %v173 = vpop.f32.mrf.mxu0
  %v174 = vadd.f32 %v54, %v173
  %175 = vmatmul.bf16.gmra.mxu0 %v91
  %v176 = vpop.f32.mrf.mxu0
  %v177 = vadd.f32 %v54, %v176
  %v178 = vpop.f32.mrf.mxu0
  %v179 = vadd.f32 %v54, %v178
  %180 = vmatmul.bf16.gmra.mxu0 %v92
  %v181 = vpop.f32.mrf.mxu0
  %v182 = vadd.f32 %v54, %v181
  %v183 = vpop.f32.mrf.mxu0
  %v184 = vadd.f32 %v54, %v183
  %185 = vmatmul.bf16.gmra.mxu0 %v93
  %v186 = vpop.f32.mrf.mxu0
  %v187 = vadd.f32 %v54, %v186
  %v188 = vpop.f32.mrf.mxu0
  %v189 = vadd.f32 %v54, %v188
  %190 = vmatmul.bf16.gmra.mxu0 %v94
  %v191 = vpop.f32.mrf.mxu0
  %v192 = vadd.f32 %v54, %v191
  %v193 = vpop.f32.mrf.mxu0
  %v194 = vadd.f32 %v54, %v193
  %195 = vmatmul.bf16.gmra.mxu0 %v95
  %v196 = vpop.f32.mrf.mxu0
  %v197 = vadd.f32 %v54, %v196
  %v198 = vpop.f32.mrf.mxu0
  %v199 = vadd.f32 %v54, %v198
  %200 = vdwg.mxu0
  %v201 = vmax.f32 %v162, 0.0
  %v202 = vmax.f32 %v164, 0.0
  %v203 = vmax.f32 %v167, 0.0
  %v204 = vmax.f32 %v169, 0.0
  %v205 = vmax.f32 %v172, 0.0
  %v206 = vmax.f32 %v174, 0.0
  %v207 = vmax.f32 %v177, 0.0
  %v208 = vmax.f32 %v179, 0.0
  %v209 = vmax.f32 %v182, 0.0
  %v210 = vmax.f32 %v184, 0.0
  %v211 = vmax.f32 %v187, 0.0
  %v212 = vmax.f32 %v189, 0.0
  %v213 = vmax.f32 %v192, 0.0
  %v214 = vmax.f32 %v194, 0.0
  %v215 = vmax.f32 %v197, 0.0
  %v216 = vmax.f32 %v199, 0.0
  %v217 = vpack.c.bf16 %v202, %v201
  %v218 = vpack.c.bf16 %v204, %v203
  %v219 = vpack.c.bf16 %v206, %v205
  %v220 = vpack.c.bf16 %v208, %v207
  %v221 = vpack.c.bf16 %v210, %v209
  %v222 = vpack.c.bf16 %v212, %v211
  %v223 = vpack.c.bf16 %v214, %v213
  %v224 = vpack.c.bf16 %v216, %v215
  %v225 = vld [vmem:[%s3] sm:$0xf]
  %v226 = vld [vmem:[%s3 + $0x4] sm:$0xf]
  %v227 = vld [vmem:[%s3 + $0x8] sm:$0xf]
  %v228 = vld [vmem:[%s3 + $0xc] sm:$0xf]
  %v229 = vld [vmem:[%s3 + $0x10] sm:$0xf]
  %v230 = vld [vmem:[%s3 + $0x14] sm:$0xf]
  %v231 = vld [vmem:[%s3 + $0x18] sm:$0xf]
  %v232 = vld [vmem:[%s3 + $0x1c] sm:$0xf]
  %v233 = vld [vmem:[%s3 + $0x20] sm:$0xf]
  %v234 = vld [vmem:[%s3 + $0x24] sm:$0xf]
  %v235 = vld [vmem:[%s3 + $0x28] sm:$0xf]
  %v236 = vld [vmem:[%s3 + $0x2c] sm:$0xf]
  %v237 = vld [vmem:[%s3 + $0x30] sm:$0xf]
  %v238 = vld [vmem:[%s3 + $0x34] sm:$0xf]
  %v239 = vld [vmem:[%s3 + $0x38] sm:$0xf]
  %v240 = vld [vmem:[%s3 + $0x3c] sm:$0xf]
  %v241 = vld [vmem:[%s4] sm:$0x1]
  %v243 = vperm.slane %v241, 0
  %v261 = vunpack.c.l.b16 %v225
  %v262 = vunpack.c.l.b16 %v226
  %v263 = vunpack.c.l.b16 %v227
  %v264 = vunpack.c.l.b16 %v228
  %v265 = vunpack.c.l.b16 %v229
  %v266 = vunpack.c.l.b16 %v230
  %v267 = vunpack.c.l.b16 %v231
  %v268 = vunpack.c.l.b16 %v232
  %v269 = vunpack.c.l.b16 %v233
  %v270 = vunpack.c.l.b16 %v234
  %v271 = vunpack.c.l.b16 %v235
  %v272 = vunpack.c.l.b16 %v236
  %v273 = vunpack.c.l.b16 %v237
  %v274 = vunpack.c.l.b16 %v238
  %v275 = vunpack.c.l.b16 %v239
  %v276 = vunpack.c.l.b16 %v240
  %v277 = vpack.c.b16 %v262, %v261
  %v278 = vpack.c.b16 %v264, %v263
  %v279 = vpack.c.b16 %v266, %v265
  %v280 = vpack.c.b16 %v268, %v267
  %v281 = vpack.c.b16 %v270, %v269
  %v282 = vpack.c.b16 %v272, %v271
  %v283 = vpack.c.b16 %v274, %v273
  %v284 = vpack.c.b16 %v276, %v275
  %293 = vmatpush.bf16.msra.mxu0 %v284
  %294 = vmatpush.bf16.msra.mxu0 %v283
  %295 = vmatpush.bf16.msra.mxu0 %v282
  %296 = vmatpush.bf16.msra.mxu0 %v281
  %297 = vmatpush.bf16.msra.mxu0 %v280
  %298 = vmatpush.bf16.msra.mxu0 %v279
  %299 = vmatpush.bf16.msra.mxu0 %v278
  %300 = vmatpush.bf16.msra.mxu0 %v277
  %301 = vmatmul.bf16.gmra.mxu0 %v217
  %v302 = vpop.f32.mrf.mxu0
  %v303 = vadd.f32 %v243, %v302
  %v304 = vpop.f32.mrf.mxu0
  %v305 = vadd.f32 %v243, %v304
  %306 = vmatmul.bf16.gmra.mxu0 %v218
  %v307 = vpop.f32.mrf.mxu0
  %v308 = vadd.f32 %v243, %v307
  %v309 = vpop.f32.mrf.mxu0
  %v310 = vadd.f32 %v243, %v309
  %311 = vmatmul.bf16.gmra.mxu0 %v219
  %v312 = vpop.f32.mrf.mxu0
  %v313 = vadd.f32 %v243, %v312
  %v314 = vpop.f32.mrf.mxu0
  %v315 = vadd.f32 %v243, %v314
  %316 = vmatmul.bf16.gmra.mxu0 %v220
  %v317 = vpop.f32.mrf.mxu0
  %v318 = vadd.f32 %v243, %v317
  %v319 = vpop.f32.mrf.mxu0
  %v320 = vadd.f32 %v243, %v319
  %321 = vmatmul.bf16.gmra.mxu0 %v221
  %v322 = vpop.f32.mrf.mxu0
  %v323 = vadd.f32 %v243, %v322
  %v324 = vpop.f32.mrf.mxu0
  %v325 = vadd.f32 %v243, %v324
  %326 = vmatmul.bf16.gmra.mxu0 %v222
  %v327 = vpop.f32.mrf.mxu0
  %v328 = vadd.f32 %v243, %v327
  %v329 = vpop.f32.mrf.mxu0
  %v330 = vadd.f32 %v243, %v329
  %331 = vmatmul.bf16.gmra.mxu0 %v223
  %v332 = vpop.f32.mrf.mxu0
  %v333 = vadd.f32 %v243, %v332
  %v334 = vpop.f32.mrf.mxu0
  %v335 = vadd.f32 %v243, %v334
  %336 = vmatmul.bf16.gmra.mxu0 %v224
  %v337 = vpop.f32.mrf.mxu0
  %v338 = vadd.f32 %v243, %v337
  %v339 = vpop.f32.mrf.mxu0
  %v340 = vadd.f32 %v243, %v339
  %341 = vdwg.mxu0
  %s342 = smul.u32 0, 128
  %v343 = vlaneseq
  %v344 = vshrl.u32 %v343, 7
  %v345 = vadd.s32 %v344, 8
  %v346 = vadd.s32 %v344, 16
  %v347 = vadd.s32 %v344, 24
  %v348 = vadd.s32 %v344, 32
  %v349 = vadd.s32 %v344, 40
  %v350 = vadd.s32 %v344, 48
  %v351 = vadd.s32 %v344, 56
  %v352 = vadd.s32 %v344, 64
  %v353 = vadd.s32 %v344, 72
  %v354 = vadd.s32 %v344, 80
  %v355 = vadd.s32 %v344, 88
  %v356 = vadd.s32 %v344, 96
  %v357 = vadd.s32 %v344, 104
  %v358 = vadd.s32 %v344, 112
  %v359 = vadd.s32 %v344, 120
  %v360 = vstv %s342
  %v361 = vadd.s32 %v360, %v344
  %v362 = vadd.s32 %v360, %v345
  %v363 = vadd.s32 %v360, %v346
  %v364 = vadd.s32 %v360, %v347
  %v365 = vadd.s32 %v360, %v348
  %v366 = vadd.s32 %v360, %v349
  %v367 = vadd.s32 %v360, %v350
  %v368 = vadd.s32 %v360, %v351
  %v369 = vadd.s32 %v360, %v352
  %v370 = vadd.s32 %v360, %v353
  %v371 = vadd.s32 %v360, %v354
  %v372 = vadd.s32 %v360, %v355
  %v373 = vadd.s32 %v360, %v356
  %v374 = vadd.s32 %v360, %v357
  %v375 = vadd.s32 %v360, %v358
  %v376 = vadd.s32 %v360, %v359
  %vm377 = vcmp.lt.s32.totalorder %v361, 16
  %vm378 = vcmp.lt.s32.totalorder %v362, 16
  %vm379 = vcmp.lt.s32.totalorder %v363, 16
  %vm380 = vcmp.lt.s32.totalorder %v364, 16
  %vm381 = vcmp.lt.s32.totalorder %v365, 16
  %vm382 = vcmp.lt.s32.totalorder %v366, 16
  %vm383 = vcmp.lt.s32.totalorder %v367, 16
  %vm384 = vcmp.lt.s32.totalorder %v368, 16
  %vm385 = vcmp.lt.s32.totalorder %v369, 16
  %vm386 = vcmp.lt.s32.totalorder %v370, 16
  %vm387 = vcmp.lt.s32.totalorder %v371, 16
  %vm388 = vcmp.lt.s32.totalorder %v372, 16
  %vm389 = vcmp.lt.s32.totalorder %v373, 16
  %vm390 = vcmp.lt.s32.totalorder %v374, 16
  %vm391 = vcmp.lt.s32.totalorder %v375, 16
  %vm392 = vcmp.lt.s32.totalorder %v376, 16
  %v393 = vsel %vm377, %v303, 0.0
  %v394 = vsel %vm378, %v305, 0.0
  %v395 = vsel %vm379, %v308, 0.0
  %v396 = vsel %vm380, %v310, 0.0
  %v397 = vsel %vm381, %v313, 0.0
  %v398 = vsel %vm382, %v315, 0.0
  %v399 = vsel %vm383, %v318, 0.0
  %v400 = vsel %vm384, %v320, 0.0
  %v401 = vsel %vm385, %v323, 0.0
  %v402 = vsel %vm386, %v325, 0.0
  %v403 = vsel %vm387, %v328, 0.0
  %v404 = vsel %vm388, %v330, 0.0
  %v405 = vsel %vm389, %v333, 0.0
  %v406 = vsel %vm390, %v335, 0.0
  %v407 = vsel %vm391, %v338, 0.0
  %v408 = vsel %vm392, %v340, 0.0
  %v409 = vpack.c.bf16 %v393, %v393
  %v410 = vpack.c.bf16 %v394, %v394
  %v411 = vpack.c.bf16 %v395, %v395
  %v412 = vpack.c.bf16 %v396, %v396
  %v413 = vpack.c.bf16 %v397, %v397
  %v414 = vpack.c.bf16 %v398, %v398
  %v415 = vpack.c.bf16 %v399, %v399
  %v416 = vpack.c.bf16 %v400, %v400
  %v417 = vpack.c.bf16 %v401, %v401
  %v418 = vpack.c.bf16 %v402, %v402
  %v419 = vpack.c.bf16 %v403, %v403
  %v420 = vpack.c.bf16 %v404, %v404
  %v421 = vpack.c.bf16 %v405, %v405
  %v422 = vpack.c.bf16 %v406, %v406
  %v423 = vpack.c.bf16 %v407, %v407
  %v424 = vpack.c.bf16 %v408, %v408
  %425 = vst [vmem:[%s5] sm:$0xf] %v409
  %426 = vst [vmem:[%s5 + $0x4] sm:$0xf] %v410
  %427 = vst [vmem:[%s5 + $0x8] sm:$0xf] %v411
  %428 = vst [vmem:[%s5 + $0xc] sm:$0xf] %v412
  %429 = vst [vmem:[%s5 + $0x10] sm:$0xf] %v413
  %430 = vst [vmem:[%s5 + $0x14] sm:$0xf] %v414
  %431 = vst [vmem:[%s5 + $0x18] sm:$0xf] %v415
  %432 = vst [vmem:[%s5 + $0x1c] sm:$0xf] %v416
  %433 = vst [vmem:[%s5 + $0x20] sm:$0xf] %v417
  %434 = vst [vmem:[%s5 + $0x24] sm:$0xf] %v418
  %435 = vst [vmem:[%s5 + $0x28] sm:$0xf] %v419
  %436 = vst [vmem:[%s5 + $0x2c] sm:$0xf] %v420
  %437 = vst [vmem:[%s5 + $0x30] sm:$0xf] %v421
  %438 = vst [vmem:[%s5 + $0x34] sm:$0xf] %v422
  %439 = vst [vmem:[%s5 + $0x38] sm:$0xf] %v423
  %440 = vst [vmem:[%s5 + $0x3c] sm:$0xf] %v424
  // Predicated region
  $region22: #{gprgnn_forward.2} parent=0 // pred_check
    _
  $region23: #{gprgnn_forward.2} parent=0 // pred_check_branch
    %442 = sbr.rel (0) target = $region25
  $region24: #{gprgnn_forward.2} parent=0 // pred_region
    _
  $region25: #{gprgnn_forward.2} parent=0 // pred_fallthru
    _
  // Predicated region
  $region26: #{gprgnn_forward.2} parent=0 // pred_check
    _
  $region27: #{gprgnn_forward.2} parent=0 // pred_check_branch
    %444 = sbr.rel (0) target = $region29
  $region28: #{gprgnn_forward.2} parent=0 // pred_region
    _
  $region29: #{gprgnn_forward.2} parent=0 // pred_fallthru
    _

// kernel: gprgnn_forward.3
$region0: #{gprgnn_forward.3}
  #allocation0 [shape = 'u32[]', space=smem, size = 0x4, offset = 0x4, fixed_abs, tag = 'smem constant byte address 0x4 - core index']
  #allocation1 [shape = 'u32[72,128]{1,0:T(1,128)}', space=vmem, size = 0x9000, scoped, tag = 'internal scratch']
  #allocation2 [shape = 'bf16[128,128]{1,0:T(8,128)(2,1)}', space=vmem, size = 0x8000, scoped, tag = 'scratch operand']
  %s0 = inlined_call_operand.vmem [shape: f32[11], index: 0, kind: input, shape index: {}]
  %s1 = inlined_call_operand.vmem [shape: bf16[128,128], index: 1, kind: input, shape index: {}]
  %s2 = inlined_call_operand.vmem [shape: bf16[128,128], index: 2, kind: input, shape index: {}]
  %s3 = inlined_call_operand.vmem [shape: f32[128,128], index: 3, kind: output, shape index: {}]
  %s4 = sld [smem:[#allocation0]]
  $region53: #{gprgnn_forward.3} parent=0
    _
  %s6 = ssub.s32 1, %s4
  %s7 = scalar_select 0, %s6, %s4
  $region1: #{gprgnn_forward.3} parent=0
    #allocation3 [shape = 'u8[512]{0}', space=smem, size = 0x200, scoped, tag = 'input window, operand 0, single buffered']
    #allocation4 [shape = 's32[2]{0}', space=sflag, size = 0x8, scoped, tag = 'scoped memory for gprgnn_forward.3']
    %8 = vsyncpa [#allocation4], 0
    loop: start=0, step=1, limit=12
    $region2: #{gprgnn_forward.3} parent=1 // loop_pre_header
      _
    $region3: #{gprgnn_forward.3} parent=1 // loop_header
      %s10 = sphi 0, %s14
      %p11 = scmp.ge.s32.totalorder %s10, 12
      %s18 = sphi 0, %s18
      %s20 = sphi 0, %s18
      %s21 = sphi 0, %s20
      %s35 = sphi 0, %s21
      %s39 = sphi 0, %s39
      %s41 = sphi 0, %s39
      %s42 = sphi 0, %s41
      %s56 = sphi 0, %s42
      %s60 = sphi 0, %s60
      %s62 = sphi 0, %s60
      %s63 = sphi 0, %s62
      %s77 = sphi 0, %s63
      %s81 = sphi 0, %s81
      %s83 = sphi 0, %s81
      %s84 = sphi 0, %s83
      %s98 = sphi 0, %s84
    $region4: #{gprgnn_forward.3} parent=1 // loop_header_branch
      %13 = sbr.rel (%p11) target = $region8
    $region5: #{gprgnn_forward.3} parent=1 // loop_body
      %s15 = ssub.s32 %s10, 1
      %s16 = ssub.s32 %s10, 2
      %s17 = sadd.s32 %s10, 1
      %s19 = sadd.s32 %s18, 1
      %p22 = scmp.eq.s32.totalorder %s10, 9
      %p23 = scmp.ne.s32.totalorder %s18, %s20
      %p24 = scmp.eq.s32.totalorder %s10, 0
      %p25 = por %p23, %p24
      %p26 = scmp.ne.s32.totalorder %s18, %s20
      %p27 = scmp.eq.s32.totalorder %s15, 9
      %p28 = por %p26, %p27
      %p29 = scmp.ne.s32.totalorder %s20, %s21
      %p30 = scmp.eq.s32.totalorder %s15, 0
      %p31 = por %p29, %p30
      %p32 = scmp.ne.s32.totalorder %s20, %s21
      %p33 = scmp.eq.s32.totalorder %s16, 9
      %p34 = por %p32, %p33
      %p36 = scmp.ne.s32.totalorder %s21, %s35
      %p37 = scmp.eq.s32.totalorder %s16, 0
      %p38 = por %p36, %p37
      %s40 = sadd.s32 %s39, 1
      %p43 = scmp.eq.s32.totalorder %s10, 9
      %p44 = scmp.ne.s32.totalorder %s39, %s41
      %p45 = scmp.eq.s32.totalorder %s10, 0
      %p46 = por %p44, %p45
      %p47 = scmp.ne.s32.totalorder %s39, %s41
      %p48 = scmp.eq.s32.totalorder %s15, 9
      %p49 = por %p47, %p48
      %p50 = scmp.ne.s32.totalorder %s41, %s42
      %p51 = scmp.eq.s32.totalorder %s15, 0
      %p52 = por %p50, %p51
      %p53 = scmp.ne.s32.totalorder %s41, %s42
      %p54 = scmp.eq.s32.totalorder %s16, 9
      %p55 = por %p53, %p54
      %p57 = scmp.ne.s32.totalorder %s42, %s56
      %p58 = scmp.eq.s32.totalorder %s16, 0
      %p59 = por %p57, %p58
      %s61 = sadd.s32 %s60, 1
      %p64 = scmp.eq.s32.totalorder %s10, 9
      %p65 = scmp.ne.s32.totalorder %s60, %s62
      %p66 = scmp.eq.s32.totalorder %s10, 0
      %p67 = por %p65, %p66
      %p68 = scmp.ne.s32.totalorder %s60, %s62
      %p69 = scmp.eq.s32.totalorder %s15, 9
      %p70 = por %p68, %p69
      %p71 = scmp.ne.s32.totalorder %s62, %s63
      %p72 = scmp.eq.s32.totalorder %s15, 0
      %p73 = por %p71, %p72
      %p74 = scmp.ne.s32.totalorder %s62, %s63
      %p75 = scmp.eq.s32.totalorder %s16, 9
      %p76 = por %p74, %p75
      %p78 = scmp.ne.s32.totalorder %s63, %s77
      %p79 = scmp.eq.s32.totalorder %s16, 0
      %p80 = por %p78, %p79
      %s82 = sadd.s32 %s81, 1
      %p85 = scmp.eq.s32.totalorder %s10, 9
      %p86 = scmp.ne.s32.totalorder %s81, %s83
      %p87 = scmp.eq.s32.totalorder %s10, 0
      %p88 = por %p86, %p87
      %p89 = scmp.ne.s32.totalorder %s81, %s83
      %p90 = scmp.eq.s32.totalorder %s15, 9
      %p91 = por %p89, %p90
      %p92 = scmp.ne.s32.totalorder %s83, %s84
      %p93 = scmp.eq.s32.totalorder %s15, 0
      %p94 = por %p92, %p93
      %p95 = scmp.ne.s32.totalorder %s83, %s84
      %p96 = scmp.eq.s32.totalorder %s16, 9
      %p97 = por %p95, %p96
      %p99 = scmp.ne.s32.totalorder %s84, %s98
      %p100 = scmp.eq.s32.totalorder %s16, 0
      %p101 = por %p99, %p100
      %p102 = scmp.le.s32.totalorder 1, %s10
      %p103 = scmp.lt.s32.totalorder %s10, 11
      %p104 = pnand %p102, %p103
      %p105 = pneg %p104
      // Predicated region
      $region9: #{gprgnn_forward.3} parent=5 // pred_check
        _
      $region10: #{gprgnn_forward.3} parent=5 // pred_check_branch
        %107 = sbr.rel (%p104) target = $region12
      $region11: #{gprgnn_forward.3} parent=5 // pred_region
        %s108 = ssub.s32 %s10, 1
        // Predicated region
        $region13: #{gprgnn_forward.3} parent=11 // pred_check
          %p109 = pneg %p31
        $region14: #{gprgnn_forward.3} parent=11 // pred_check_branch
          %111 = sbr.rel (%p109) target = $region16
        $region15: #{gprgnn_forward.3} parent=11 // pred_region
          %113 = vsyncadd [#allocation4], 0
          %s115 = sshll.u32 %s0, 4
          %s116 = int_to_ptr.vmem [resolvable:$true] %s115
          %118 = dma.vmem_to_smem %s116, 16, [#allocation3], [#allocation4]
        $region16: #{gprgnn_forward.3} parent=11 // pred_fallthru
          _
        // Predicated region
        $region17: #{gprgnn_forward.3} parent=11 // pred_check
          %p119 = pneg %p52
        $region18: #{gprgnn_forward.3} parent=11 // pred_check_branch
          %121 = sbr.rel (%p119) target = $region20
        $region19: #{gprgnn_forward.3} parent=11 // pred_region
          _
        $region20: #{gprgnn_forward.3} parent=11 // pred_fallthru
          _
        // Predicated region
        $region21: #{gprgnn_forward.3} parent=11 // pred_check
          %p122 = pneg %p73
        $region22: #{gprgnn_forward.3} parent=11 // pred_check_branch
          %124 = sbr.rel (%p122) target = $region24
        $region23: #{gprgnn_forward.3} parent=11 // pred_region
          _
        $region24: #{gprgnn_forward.3} parent=11 // pred_fallthru
          _
      $region12: #{gprgnn_forward.3} parent=5 // pred_fallthru
        _
      %p125 = scmp.lt.s32.totalorder %s10, 10
      // Predicated region
      $region25: #{gprgnn_forward.3} parent=5 // pred_check
        %p126 = pneg %p125
      $region26: #{gprgnn_forward.3} parent=5 // pred_check_branch
        %128 = sbr.rel (%p126) target = $region28
      $region27: #{gprgnn_forward.3} parent=5 // pred_region
        _
      $region28: #{gprgnn_forward.3} parent=5 // pred_fallthru
        _
      %p129 = scmp.le.s32.totalorder 1, %s10
      %p130 = scmp.lt.s32.totalorder %s10, 11
      %p131 = pnand %p129, %p130
      %p132 = pneg %p131
      // Predicated region
      $region29: #{gprgnn_forward.3} parent=5 // pred_check
        _
      $region30: #{gprgnn_forward.3} parent=5 // pred_check_branch
        %134 = sbr.rel (%p131) target = $region32
      $region31: #{gprgnn_forward.3} parent=5 // pred_region
        %s135 = ssub.s32 %s10, 1
        // Predicated region
        $region33: #{gprgnn_forward.3} parent=31 // pred_check
          %p136 = pneg %p31
        $region34: #{gprgnn_forward.3} parent=31 // pred_check_branch
          %138 = sbr.rel (%p136) target = $region36
        $region35: #{gprgnn_forward.3} parent=31 // pred_region
          %140 = dma.done [#allocation4], 16
        $region36: #{gprgnn_forward.3} parent=31 // pred_fallthru
          _
        %141 = sfence
        %p142 = pneg %p31
        %p143 = pneg %p28
        %p144 = pneg %p52
        %p145 = pneg %p49
        %p146 = pneg %p73
        %p147 = pneg %p70
        %p148 = pneg %p94
        %p149 = pneg %p91
        %p150 = scmp.eq.s32.totalorder %s15, 0
        // Predicated region
        $region37: #{gprgnn_forward.3} parent=31 // pred_check
          %p151 = pneg %p150
        $region38: #{gprgnn_forward.3} parent=31 // pred_check_branch
          %153 = sbr.rel (%p151) target = $region40
        $region39: #{gprgnn_forward.3} parent=31 // pred_region
          %v154 = vld [vmem:[%s1] sm:$0xf]
          %v155 = vld [vmem:[%s1 + $0x4] sm:$0xf]
          %v156 = vld [vmem:[%s1 + $0x8] sm:$0xf]
          %v157 = vld [vmem:[%s1 + $0xc] sm:$0xf]
          %v158 = vld [vmem:[%s1 + $0x10] sm:$0xf]
          %v159 = vld [vmem:[%s1 + $0x14] sm:$0xf]
          %v160 = vld [vmem:[%s1 + $0x18] sm:$0xf]
          %v161 = vld [vmem:[%s1 + $0x1c] sm:$0xf]
          %v162 = vld [vmem:[%s1 + $0x20] sm:$0xf]
          %v163 = vld [vmem:[%s1 + $0x24] sm:$0xf]
          %v164 = vld [vmem:[%s1 + $0x28] sm:$0xf]
          %v165 = vld [vmem:[%s1 + $0x2c] sm:$0xf]
          %v166 = vld [vmem:[%s1 + $0x30] sm:$0xf]
          %v167 = vld [vmem:[%s1 + $0x34] sm:$0xf]
          %v168 = vld [vmem:[%s1 + $0x38] sm:$0xf]
          %v169 = vld [vmem:[%s1 + $0x3c] sm:$0xf]
          %s170 = sld [smem:[#allocation3]]
          %v171 = vunpack.c.l.bf16 %v154
          %v172 = vunpack.c.l.bf16 %v155
          %v173 = vunpack.c.l.bf16 %v156
          %v174 = vunpack.c.l.bf16 %v157
          %v175 = vunpack.c.l.bf16 %v158
          %v176 = vunpack.c.l.bf16 %v159
          %v177 = vunpack.c.l.bf16 %v160
          %v178 = vunpack.c.l.bf16 %v161
          %v179 = vunpack.c.l.bf16 %v162
          %v180 = vunpack.c.l.bf16 %v163
          %v181 = vunpack.c.l.bf16 %v164
          %v182 = vunpack.c.l.bf16 %v165
          %v183 = vunpack.c.l.bf16 %v166
          %v184 = vunpack.c.l.bf16 %v167
          %v185 = vunpack.c.l.bf16 %v168
          %v186 = vunpack.c.l.bf16 %v169
          %v187 = vstv %s170
          %v188 = vmul.f32 %v187, %v171
          %v189 = vmul.f32 %v187, %v172
          %v190 = vmul.f32 %v187, %v173
          %v191 = vmul.f32 %v187, %v174
          %v192 = vmul.f32 %v187, %v175
          %v193 = vmul.f32 %v187, %v176
          %v194 = vmul.f32 %v187, %v177
          %v195 = vmul.f32 %v187, %v178
          %v196 = vmul.f32 %v187, %v179
          %v197 = vmul.f32 %v187, %v180
          %v198 = vmul.f32 %v187, %v181
          %v199 = vmul.f32 %v187, %v182
          %v200 = vmul.f32 %v187, %v183
          %v201 = vmul.f32 %v187, %v184
          %v202 = vmul.f32 %v187, %v185
          %v203 = vmul.f32 %v187, %v186
          %204 = vst [vmem:[%s3] sm:$0xff] %v188
          %205 = vst [vmem:[%s3 + $0x8] sm:$0xff] %v189
          %206 = vst [vmem:[%s3 + $0x10] sm:$0xff] %v190
          %207 = vst [vmem:[%s3 + $0x18] sm:$0xff] %v191
          %208 = vst [vmem:[%s3 + $0x20] sm:$0xff] %v192
          %209 = vst [vmem:[%s3 + $0x28] sm:$0xff] %v193
          %210 = vst [vmem:[%s3 + $0x30] sm:$0xff] %v194
          %211 = vst [vmem:[%s3 + $0x38] sm:$0xff] %v195
          %212 = vst [vmem:[%s3 + $0x40] sm:$0xff] %v196
          %213 = vst [vmem:[%s3 + $0x48] sm:$0xff] %v197
          %214 = vst [vmem:[%s3 + $0x50] sm:$0xff] %v198
          %215 = vst [vmem:[%s3 + $0x58] sm:$0xff] %v199
          %216 = vst [vmem:[%s3 + $0x60] sm:$0xff] %v200
          %217 = vst [vmem:[%s3 + $0x68] sm:$0xff] %v201
          %218 = vst [vmem:[%s3 + $0x70] sm:$0xff] %v202
          %219 = vst [vmem:[%s3 + $0x78] sm:$0xff] %v203
          %220 = vst [vmem:[#allocation2] sm:$0xf] %v154
          %221 = vst [vmem:[#allocation2 + $0x4] sm:$0xf] %v155
          %222 = vst [vmem:[#allocation2 + $0x8] sm:$0xf] %v156
          %223 = vst [vmem:[#allocation2 + $0xc] sm:$0xf] %v157
          %224 = vst [vmem:[#allocation2 + $0x10] sm:$0xf] %v158
          %225 = vst [vmem:[#allocation2 + $0x14] sm:$0xf] %v159
          %226 = vst [vmem:[#allocation2 + $0x18] sm:$0xf] %v160
          %227 = vst [vmem:[#allocation2 + $0x1c] sm:$0xf] %v161
          %228 = vst [vmem:[#allocation2 + $0x20] sm:$0xf] %v162
          %229 = vst [vmem:[#allocation2 + $0x24] sm:$0xf] %v163
          %230 = vst [vmem:[#allocation2 + $0x28] sm:$0xf] %v164
          %231 = vst [vmem:[#allocation2 + $0x2c] sm:$0xf] %v165
          %232 = vst [vmem:[#allocation2 + $0x30] sm:$0xf] %v166
          %233 = vst [vmem:[#allocation2 + $0x34] sm:$0xf] %v167
          %234 = vst [vmem:[#allocation2 + $0x38] sm:$0xf] %v168
          %235 = vst [vmem:[#allocation2 + $0x3c] sm:$0xf] %v169
        $region40: #{gprgnn_forward.3} parent=31 // pred_fallthru
          _
        %v236 = vld [vmem:[%s2] sm:$0xf]
        %v237 = vld [vmem:[%s2 + $0x4] sm:$0xf]
        %v238 = vld [vmem:[%s2 + $0x8] sm:$0xf]
        %v239 = vld [vmem:[%s2 + $0xc] sm:$0xf]
        %v240 = vld [vmem:[%s2 + $0x10] sm:$0xf]
        %v241 = vld [vmem:[%s2 + $0x14] sm:$0xf]
        %v242 = vld [vmem:[%s2 + $0x18] sm:$0xf]
        %v243 = vld [vmem:[%s2 + $0x1c] sm:$0xf]
        %v244 = vld [vmem:[%s2 + $0x20] sm:$0xf]
        %v245 = vld [vmem:[%s2 + $0x24] sm:$0xf]
        %v246 = vld [vmem:[%s2 + $0x28] sm:$0xf]
        %v247 = vld [vmem:[%s2 + $0x2c] sm:$0xf]
        %v248 = vld [vmem:[%s2 + $0x30] sm:$0xf]
        %v249 = vld [vmem:[%s2 + $0x34] sm:$0xf]
        %v250 = vld [vmem:[%s2 + $0x38] sm:$0xf]
        %v251 = vld [vmem:[%s2 + $0x3c] sm:$0xf]
        %v252 = vld [vmem:[#allocation2] sm:$0xf]
        %v253 = vld [vmem:[#allocation2 + $0x4] sm:$0xf]
        %v254 = vld [vmem:[#allocation2 + $0x8] sm:$0xf]
        %v255 = vld [vmem:[#allocation2 + $0xc] sm:$0xf]
        %v256 = vld [vmem:[#allocation2 + $0x10] sm:$0xf]
        %v257 = vld [vmem:[#allocation2 + $0x14] sm:$0xf]
        %v258 = vld [vmem:[#allocation2 + $0x18] sm:$0xf]
        %v259 = vld [vmem:[#allocation2 + $0x1c] sm:$0xf]
        %v260 = vld [vmem:[#allocation2 + $0x20] sm:$0xf]
        %v261 = vld [vmem:[#allocation2 + $0x24] sm:$0xf]
        %v262 = vld [vmem:[#allocation2 + $0x28] sm:$0xf]
        %v263 = vld [vmem:[#allocation2 + $0x2c] sm:$0xf]
        %v264 = vld [vmem:[#allocation2 + $0x30] sm:$0xf]
        %v265 = vld [vmem:[#allocation2 + $0x34] sm:$0xf]
        %v266 = vld [vmem:[#allocation2 + $0x38] sm:$0xf]
        %v267 = vld [vmem:[#allocation2 + $0x3c] sm:$0xf]
        %v284 = vunpack.c.l.b16 %v236
        %v285 = vunpack.c.l.b16 %v237
        %v286 = vunpack.c.l.b16 %v238
        %v287 = vunpack.c.l.b16 %v239
        %v288 = vunpack.c.l.b16 %v240
        %v289 = vunpack.c.l.b16 %v241
        %v290 = vunpack.c.l.b16 %v242
        %v291 = vunpack.c.l.b16 %v243
        %v292 = vunpack.c.l.b16 %v244
        %v293 = vunpack.c.l.b16 %v245
        %v294 = vunpack.c.l.b16 %v246
        %v295 = vunpack.c.l.b16 %v247
        %v296 = vunpack.c.l.b16 %v248
        %v297 = vunpack.c.l.b16 %v249
        %v298 = vunpack.c.l.b16 %v250
        %v299 = vunpack.c.l.b16 %v251
        %v300 = vpack.c.b16 %v285, %v284
        %v301 = vpack.c.b16 %v287, %v286
        %v302 = vpack.c.b16 %v289, %v288
        %v303 = vpack.c.b16 %v291, %v290
        %v304 = vpack.c.b16 %v293, %v292
        %v305 = vpack.c.b16 %v295, %v294
        %v306 = vpack.c.b16 %v297, %v296
        %v307 = vpack.c.b16 %v299, %v298
        %v332 = vunpack.c.l.b16 %v252
        %v333 = vunpack.c.l.b16 %v253
        %v334 = vunpack.c.l.b16 %v254
        %v335 = vunpack.c.l.b16 %v255
        %v336 = vunpack.c.l.b16 %v256
        %v337 = vunpack.c.l.b16 %v257
        %v338 = vunpack.c.l.b16 %v258
        %v339 = vunpack.c.l.b16 %v259
        %v340 = vunpack.c.l.b16 %v260
        %v341 = vunpack.c.l.b16 %v261
        %v342 = vunpack.c.l.b16 %v262
        %v343 = vunpack.c.l.b16 %v263
        %v344 = vunpack.c.l.b16 %v264
        %v345 = vunpack.c.l.b16 %v265
        %v346 = vunpack.c.l.b16 %v266
        %v347 = vunpack.c.l.b16 %v267
        %v348 = vpack.c.b16 %v333, %v332
        %v349 = vpack.c.b16 %v335, %v334
        %v350 = vpack.c.b16 %v337, %v336
        %v351 = vpack.c.b16 %v339, %v338
        %v352 = vpack.c.b16 %v341, %v340
        %v353 = vpack.c.b16 %v343, %v342
        %v354 = vpack.c.b16 %v345, %v344
        %v355 = vpack.c.b16 %v347, %v346
        %364 = vmatpush.bf16.msra.mxu0 %v355
        %365 = vmatpush.bf16.msra.mxu0 %v354
        %366 = vmatpush.bf16.msra.mxu0 %v353
        %367 = vmatpush.bf16.msra.mxu0 %v352
        %368 = vmatpush.bf16.msra.mxu0 %v351
        %369 = vmatpush.bf16.msra.mxu0 %v350
        %370 = vmatpush.bf16.msra.mxu0 %v349
        %371 = vmatpush.bf16.msra.mxu0 %v348
        %372 = vmatmul.bf16.gmra.mxu0 %v300
        %v373 = vpop.f32.mrf.mxu0
        %v374 = vadd.f32 0.0, %v373
        %v375 = vpop.f32.mrf.mxu0
        %v376 = vadd.f32 0.0, %v375
        %377 = vmatmul.bf16.gmra.mxu0 %v301
        %v378 = vpop.f32.mrf.mxu0
        %v379 = vadd.f32 0.0, %v378
        %v380 = vpop.f32.mrf.mxu0
        %v381 = vadd.f32 0.0, %v380
        %382 = vmatmul.bf16.gmra.mxu0 %v302
        %v383 = vpop.f32.mrf.mxu0
        %v384 = vadd.f32 0.0, %v383
        %v385 = vpop.f32.mrf.mxu0
        %v386 = vadd.f32 0.0, %v385
        %387 = vmatmul.bf16.gmra.mxu0 %v303
        %v388 = vpop.f32.mrf.mxu0
        %v389 = vadd.f32 0.0, %v388
        %v390 = vpop.f32.mrf.mxu0
        %v391 = vadd.f32 0.0, %v390
        %392 = vmatmul.bf16.gmra.mxu0 %v304
        %v393 = vpop.f32.mrf.mxu0
        %v394 = vadd.f32 0.0, %v393
        %v395 = vpop.f32.mrf.mxu0
        %v396 = vadd.f32 0.0, %v395
        %397 = vmatmul.bf16.gmra.mxu0 %v305
        %v398 = vpop.f32.mrf.mxu0
        %v399 = vadd.f32 0.0, %v398
        %v400 = vpop.f32.mrf.mxu0
        %v401 = vadd.f32 0.0, %v400
        %402 = vmatmul.bf16.gmra.mxu0 %v306
        %v403 = vpop.f32.mrf.mxu0
        %v404 = vadd.f32 0.0, %v403
        %v405 = vpop.f32.mrf.mxu0
        %v406 = vadd.f32 0.0, %v405
        %407 = vmatmul.bf16.gmra.mxu0 %v307
        %v408 = vpop.f32.mrf.mxu0
        %v409 = vadd.f32 0.0, %v408
        %v410 = vpop.f32.mrf.mxu0
        %v411 = vadd.f32 0.0, %v410
        %412 = vdwg.mxu0
        %v413 = vld [vmem:[%s3] sm:$0xff]
        %v414 = vld [vmem:[%s3 + $0x8] sm:$0xff]
        %v415 = vld [vmem:[%s3 + $0x10] sm:$0xff]
        %v416 = vld [vmem:[%s3 + $0x18] sm:$0xff]
        %v417 = vld [vmem:[%s3 + $0x20] sm:$0xff]
        %v418 = vld [vmem:[%s3 + $0x28] sm:$0xff]
        %v419 = vld [vmem:[%s3 + $0x30] sm:$0xff]
        %v420 = vld [vmem:[%s3 + $0x38] sm:$0xff]
        %v421 = vld [vmem:[%s3 + $0x40] sm:$0xff]
        %v422 = vld [vmem:[%s3 + $0x48] sm:$0xff]
        %v423 = vld [vmem:[%s3 + $0x50] sm:$0xff]
        %v424 = vld [vmem:[%s3 + $0x58] sm:$0xff]
        %v425 = vld [vmem:[%s3 + $0x60] sm:$0xff]
        %v426 = vld [vmem:[%s3 + $0x68] sm:$0xff]
        %v427 = vld [vmem:[%s3 + $0x70] sm:$0xff]
        %v428 = vld [vmem:[%s3 + $0x78] sm:$0xff]
        %s429 = sadd.s32 %s15, 1
        %s430 = sld [smem:[#allocation3 + %s429]]
        %v431 = vstv %s430
        %v432 = vmul.f32 %v431, %v374
        %v433 = vmul.f32 %v431, %v376
        %v434 = vmul.f32 %v431, %v379
        %v435 = vmul.f32 %v431, %v381
        %v436 = vmul.f32 %v431, %v384
        %v437 = vmul.f32 %v431, %v386
        %v438 = vmul.f32 %v431, %v389
        %v439 = vmul.f32 %v431, %v391
        %v440 = vmul.f32 %v431, %v394
        %v441 = vmul.f32 %v431, %v396
        %v442 = vmul.f32 %v431, %v399
        %v443 = vmul.f32 %v431, %v401
        %v444 = vmul.f32 %v431, %v404
        %v445 = vmul.f32 %v431, %v406
        %v446 = vmul.f32 %v431, %v409
        %v447 = vmul.f32 %v431, %v411
        %v448 = vadd.f32 %v413, %v432
        %v449 = vadd.f32 %v414, %v433
        %v450 = vadd.f32 %v415, %v434
        %v451 = vadd.f32 %v416, %v435
        %v452 = vadd.f32 %v417, %v436
        %v453 = vadd.f32 %v418, %v437
        %v454 = vadd.f32 %v419, %v438
        %v455 = vadd.f32 %v420, %v439
        %v456 = vadd.f32 %v421, %v440
        %v457 = vadd.f32 %v422, %v441
        %v458 = vadd.f32 %v423, %v442
        %v459 = vadd.f32 %v424, %v443
        %v460 = vadd.f32 %v425, %v444
        %v461 = vadd.f32 %v426, %v445
        %v462 = vadd.f32 %v427, %v446
        %v463 = vadd.f32 %v428, %v447
        %464 = vst [vmem:[%s3] sm:$0xff] %v448
        %465 = vst [vmem:[%s3 + $0x8] sm:$0xff] %v449
        %466 = vst [vmem:[%s3 + $0x10] sm:$0xff] %v450
        %467 = vst [vmem:[%s3 + $0x18] sm:$0xff] %v451
        %468 = vst [vmem:[%s3 + $0x20] sm:$0xff] %v452
        %469 = vst [vmem:[%s3 + $0x28] sm:$0xff] %v453
        %470 = vst [vmem:[%s3 + $0x30] sm:$0xff] %v454
        %471 = vst [vmem:[%s3 + $0x38] sm:$0xff] %v455
        %472 = vst [vmem:[%s3 + $0x40] sm:$0xff] %v456
        %473 = vst [vmem:[%s3 + $0x48] sm:$0xff] %v457
        %474 = vst [vmem:[%s3 + $0x50] sm:$0xff] %v458
        %475 = vst [vmem:[%s3 + $0x58] sm:$0xff] %v459
        %476 = vst [vmem:[%s3 + $0x60] sm:$0xff] %v460
        %477 = vst [vmem:[%s3 + $0x68] sm:$0xff] %v461
        %478 = vst [vmem:[%s3 + $0x70] sm:$0xff] %v462
        %479 = vst [vmem:[%s3 + $0x78] sm:$0xff] %v463
        %v480 = vpack.c.bf16 %v374, %v374
        %v481 = vpack.c.bf16 %v376, %v376
        %v482 = vpack.c.bf16 %v379, %v379
        %v483 = vpack.c.bf16 %v381, %v381
        %v484 = vpack.c.bf16 %v384, %v384
        %v485 = vpack.c.bf16 %v386, %v386
        %v486 = vpack.c.bf16 %v389, %v389
        %v487 = vpack.c.bf16 %v391, %v391
        %v488 = vpack.c.bf16 %v394, %v394
        %v489 = vpack.c.bf16 %v396, %v396
        %v490 = vpack.c.bf16 %v399, %v399
        %v491 = vpack.c.bf16 %v401, %v401
        %v492 = vpack.c.bf16 %v404, %v404
        %v493 = vpack.c.bf16 %v406, %v406
        %v494 = vpack.c.bf16 %v409, %v409
        %v495 = vpack.c.bf16 %v411, %v411
        %496 = vst [vmem:[#allocation2] sm:$0xf] %v480
        %497 = vst [vmem:[#allocation2 + $0x4] sm:$0xf] %v481
        %498 = vst [vmem:[#allocation2 + $0x8] sm:$0xf] %v482
        %499 = vst [vmem:[#allocation2 + $0xc] sm:$0xf] %v483
        %500 = vst [vmem:[#allocation2 + $0x10] sm:$0xf] %v484
        %501 = vst [vmem:[#allocation2 + $0x14] sm:$0xf] %v485
        %502 = vst [vmem:[#allocation2 + $0x18] sm:$0xf] %v486
        %503 = vst [vmem:[#allocation2 + $0x1c] sm:$0xf] %v487
        %504 = vst [vmem:[#allocation2 + $0x20] sm:$0xf] %v488
        %505 = vst [vmem:[#allocation2 + $0x24] sm:$0xf] %v489
        %506 = vst [vmem:[#allocation2 + $0x28] sm:$0xf] %v490
        %507 = vst [vmem:[#allocation2 + $0x2c] sm:$0xf] %v491
        %508 = vst [vmem:[#allocation2 + $0x30] sm:$0xf] %v492
        %509 = vst [vmem:[#allocation2 + $0x34] sm:$0xf] %v493
        %510 = vst [vmem:[#allocation2 + $0x38] sm:$0xf] %v494
        %511 = vst [vmem:[#allocation2 + $0x3c] sm:$0xf] %v495
        // Predicated region
        $region41: #{gprgnn_forward.3} parent=31 // pred_check
          %p512 = pneg %p91
        $region42: #{gprgnn_forward.3} parent=31 // pred_check_branch
          %514 = sbr.rel (%p512) target = $region44
        $region43: #{gprgnn_forward.3} parent=31 // pred_region
          _
        $region44: #{gprgnn_forward.3} parent=31 // pred_fallthru
          _
        // Predicated region
        $region45: #{gprgnn_forward.3} parent=31 // pred_check
          %p515 = pneg %p91
        $region46: #{gprgnn_forward.3} parent=31 // pred_check_branch
          %517 = sbr.rel (%p515) target = $region48
        $region47: #{gprgnn_forward.3} parent=31 // pred_region
          _
        $region48: #{gprgnn_forward.3} parent=31 // pred_fallthru
          _
      $region32: #{gprgnn_forward.3} parent=5 // pred_fallthru
        _
      %p518 = scmp.le.s32.totalorder 2, %s10
      // Predicated region
      $region49: #{gprgnn_forward.3} parent=5 // pred_check
        %p519 = pneg %p518
      $region50: #{gprgnn_forward.3} parent=5 // pred_check_branch
        %521 = sbr.rel (%p519) target = $region52
      $region51: #{gprgnn_forward.3} parent=5 // pred_region
        %s522 = ssub.s32 %s10, 2
      $region52: #{gprgnn_forward.3} parent=5 // pred_fallthru
        _
    $region6: #{gprgnn_forward.3} parent=1 // loop_footer
      %s14 = sadd.s32 1, %s10
    $region7: #{gprgnn_forward.3} parent=1 // loop_footer_branch
      %9 = sbr.rel target = $region3
    $region8: #{gprgnn_forward.3} parent=1 // loop_exit
      _
    %523 = vsyncpa [#allocation4], 1
    %s524 = scalar_lea.sflag [#allocation4], 1
    %525 = vsyncpa %s524, 1

</llo_original>
